<compile_context>
chip_gen: v5e
topology: v5e:2x2
jax: 0.10.0
libtpu: 0.0.40
codegen_flags: <defaults>
</compile_context>

<pallas_src>
import functools

import jax
import jax.numpy as jnp
from jax.experimental import pallas as pl
from jax.experimental.pallas import tpu as pltpu

LANE = 128


def _round_up(x: int, m: int) -> int:
    return ((x + m - 1) // m) * m


def _sublane(dtype) -> int:
    # Minimum second-to-last tile dim: 8 for 4-byte, 16 for 2-byte, 32 for 1-byte.
    return max(8, 32 // jnp.dtype(dtype).itemsize)


def _vmem_capacity_bytes() -> int:
    try:
        cap = int(pltpu.get_tpu_info().vmem_capacity_bytes)
        if cap > 0:
            return cap
    except Exception:
        pass
    return 64 * 1024 * 1024  # conservative fallback (v7x per-TC VMEM)


# ------------------------------- kernels ------------------------------------


def _mlp_kernel_resident(x_ref, w1_ref, b1_ref, w2_ref, b2_ref, o_ref):
    """Both weight matrices VMEM-resident; one batch tile per grid step."""
    h = jnp.dot(x_ref[...], w1_ref[...], preferred_element_type=jnp.float32)
    h = jnp.maximum(h + b1_ref[...], 0.0)                       # fp32 VPU epilogue
    y = jnp.dot(h.astype(w2_ref.dtype), w2_ref[...],
                preferred_element_type=jnp.float32)
    o_ref[...] = (y + b2_ref[...]).astype(o_ref.dtype)


def _mlp_kernel_hsplit(x_ref, w1_ref, b1_ref, w2_ref, b2_ref, o_ref, acc_ref):
    """Hidden dim streamed in chunks; partial fc2 accumulated in fp32 scratch."""
    h_idx = pl.program_id(1)

    @pl.when(h_idx == 0)
    def _():
        acc_ref[...] = jnp.zeros_like(acc_ref)

    h = jnp.dot(x_ref[...], w1_ref[...], preferred_element_type=jnp.float32)
    h = jnp.maximum(h + b1_ref[...], 0.0)
    acc_ref[...] += jnp.dot(h.astype(w2_ref.dtype), w2_ref[...],
                            preferred_element_type=jnp.float32)

    @pl.when(h_idx == pl.num_programs(1) - 1)
    def _():
        o_ref[...] = (acc_ref[...] + b2_ref[...]).astype(o_ref.dtype)


# ------------------------------ core (jitted) --------------------------------


@functools.partial(
    jax.jit,
    static_argnames=("tb", "th", "d_out", "single_buffer", "vmem_limit"))
def _mlp_forward_core(x, w1_p, b1_p, w2_p, b2_p, *, tb, th, d_out,
                      single_buffer, vmem_limit):
    B, D_in = x.shape
    D_in_p, H_p = w1_p.shape
    D_out_p = w2_p.shape[1]
    compute_dtype = w1_p.dtype
    out_dtype = x.dtype

    B_p = _round_up(B, tb)
    grid_b = B_p // tb

    # Pad / cast x only when needed (skipped entirely for aligned inputs).
    if (B, D_in) == (B_p, D_in_p) and x.dtype == compute_dtype:
        x_in = x
    else:
        x_in = jnp.zeros((B_p, D_in_p), compute_dtype).at[:B, :D_in].set(
            x.astype(compute_dtype))

    cbytes = jnp.dtype(compute_dtype).itemsize
    obytes = jnp.dtype(out_dtype).itemsize
    flops = 2 * B_p * (D_in_p * H_p + H_p * D_out_p)
    bytes_accessed = (B_p * D_in_p * cbytes
                      + (D_in_p * H_p + H_p * D_out_p) * cbytes
                      + (H_p + D_out_p) * 4
                      + B_p * D_out_p * obytes)
    cost = pl.CostEstimate(flops=flops, transcendentals=0,
                           bytes_accessed=bytes_accessed)

    def resident_spec(shape, imap):
        # Constant index map -> no refetch after step 0; single-buffer to halve
        # the resident-weight VMEM footprint when supported.
        if single_buffer:
            return pl.BlockSpec(shape, imap, pipeline_mode=pl.Buffered(1))
        return pl.BlockSpec(shape, imap)

    if th == 0 or th >= H_p:
        # ---- weights fully resident; 1-D grid over batch tiles --------------
        grid_spec = pltpu.PrefetchScalarGridSpec(
            num_scalar_prefetch=0,
            grid=(grid_b,),
            in_specs=[
                pl.BlockSpec((tb, D_in_p), lambda i: (i, 0)),          # x tile
                resident_spec((D_in_p, H_p), lambda i: (0, 0)),        # w1
                resident_spec((1, H_p), lambda i: (0, 0)),             # b1
                resident_spec((H_p, D_out_p), lambda i: (0, 0)),       # w2
                resident_spec((1, D_out_p), lambda i: (0, 0)),         # b2
            ],
            out_specs=pl.BlockSpec((tb, D_out_p), lambda i: (i, 0)),
        )
        kernel = _mlp_kernel_resident
        dim_sem = ("parallel",)
    else:
        # ---- hidden dim streamed over a trailing reduction axis -------------
        grid_h = H_p // th
        grid_spec = pltpu.PrefetchScalarGridSpec(
            num_scalar_prefetch=0,
            grid=(grid_b, grid_h),
            in_specs=[
                pl.BlockSpec((tb, D_in_p), lambda i, h: (i, 0)),       # x tile
                pl.BlockSpec((D_in_p, th), lambda i, h: (0, h)),       # w1 chunk
                pl.BlockSpec((1, th), lambda i, h: (0, h)),            # b1 chunk
                pl.BlockSpec((th, D_out_p), lambda i, h: (h, 0)),      # w2 chunk
                pl.BlockSpec((1, D_out_p), lambda i, h: (0, 0)),       # b2
            ],
            out_specs=pl.BlockSpec((tb, D_out_p), lambda i, h: (i, 0)),
            scratch_shapes=[pltpu.VMEM((tb, D_out_p), jnp.float32)],   # fc2 acc
        )
        kernel = _mlp_kernel_hsplit
        dim_sem = ("parallel", "arbitrary")

    out_p = pl.pallas_call(
        kernel,
        out_shape=jax.ShapeDtypeStruct((B_p, D_out_p), out_dtype),
        grid_spec=grid_spec,
        compiler_params=pltpu.CompilerParams(
            dimension_semantics=dim_sem,
            vmem_limit_bytes=vmem_limit),
        cost_estimate=cost,
    )(x_in, w1_p, b1_p, w2_p, b2_p)

    if (B_p, D_out_p) == (B, d_out):
        return out_p
    return out_p[:B, :d_out]


# ------------------------------ host-side API --------------------------------


def prepare_mlp_params(w1, b1, w2, b2, *, compute_dtype=jnp.bfloat16):
    """Pad/cast the fc weights ONCE (hoisted out of the per-forward path).

    w1: [D_in, H], b1: [H], w2: [H, D_out], b2: [D_out]  ([in, out] layout,
    i.e. the transpose of nn.Linear's .weight).
    """
    D_in, H = w1.shape
    D_out = w2.shape[1]
    D_in_p, H_p, D_out_p = (_round_up(d, LANE) for d in (D_in, H, D_out))
    w1_p = jnp.zeros((D_in_p, H_p), compute_dtype).at[:D_in, :H].set(
        w1.astype(compute_dtype))
    w2_p = jnp.zeros((H_p, D_out_p), compute_dtype).at[:H, :D_out].set(
        w2.astype(compute_dtype))
    # Biases stay fp32: bias add + ReLU run in fp32 inside the kernel.
    b1_p = jnp.zeros((1, H_p), jnp.float32).at[0, :H].set(b1.astype(jnp.float32))
    b2_p = jnp.zeros((1, D_out_p), jnp.float32).at[0, :D_out].set(
        b2.astype(jnp.float32))
    return {"w1": w1_p, "b1": b1_p, "w2": w2_p, "b2": b2_p, "d_out": D_out}


def _plan_tiles(B, D_in_p, H_p, D_out_p, compute_dtype, out_dtype, block_b,
                assume_single_buffer=True):
    cbytes = jnp.dtype(compute_dtype).itemsize
    obytes = jnp.dtype(out_dtype).itemsize
    sub = max(_sublane(compute_dtype), _sublane(out_dtype))
    wmult = 1 if assume_single_buffer else 2

    # Generation-aware budget: ~80% of per-core VMEM (keeps slack on v7x,
    # uses v5e/v6e's 128 MiB instead of a universal 40 MiB cap).
    budget = min(int(_vmem_capacity_bytes() * 0.80), 112 * 1024 * 1024)
    budget = max(budget, 16 * 1024 * 1024)
    b_sub = _round_up(B, sub)

    def nosplit_bytes(tb):
        return (2 * tb * D_in_p * cbytes                       # x tile (dbl-buf)
                + 2 * tb * D_out_p * obytes                    # y tile (dbl-buf)
                + wmult * (D_in_p * H_p + H_p * D_out_p) * cbytes
                + wmult * (H_p + D_out_p) * 4
                + tb * H_p * 4 + tb * D_out_p * 4)             # fp32 intermediates

    def split_bytes(tb, th):
        return (2 * tb * D_in_p * cbytes
                + 2 * tb * D_out_p * obytes
                + 2 * (D_in_p * th + th * D_out_p) * cbytes    # streamed W chunks
                + 2 * th * 4 + 2 * D_out_p * 4
                + tb * th * 4 + tb * D_out_p * 4)              # h chunk + fp32 acc

    def initial_tb():
        tb = min(block_b, b_sub)
        if b_sub >= 2 * 128:
            # Cap TB so grid_b >= 2: the "parallel" batch axis can then shard
            # across both v7x TensorCores (no effect on single-TC v5e/v6e).
            tb = min(tb, _round_up((b_sub + 1) // 2, 128))
        return _round_up(tb, 128) if tb >= 128 else _round_up(tb, sub)

    def shrink(tb):
        if tb > 128:
            return _round_up(tb // 2, 128)
        return max(sub, _round_up(tb // 2, sub))

    resident = (D_in_p * H_p + H_p * D_out_p) * cbytes + (H_p + D_out_p) * 4
    tb = initial_tb()
    single_buffer = assume_single_buffer

    if resident * wmult <= 0.6 * budget:
        th = 0                                   # weights fully resident
        while tb > sub and nosplit_bytes(tb) > budget:
            tb = shrink(tb)
    else:
        # Hidden too large for residency (e.g. v7x 64 MiB): split H.
        single_buffer = False
        divisors = [t for t in range(LANE, min(H_p, 2048) + 1, LANE)
                    if H_p % t == 0]
        th = divisors[0]
        while True:
            fit = [t for t in divisors if split_bytes(tb, t) <= budget]
            if fit:
                th = fit[-1]
                break
            if tb > sub:
                tb = shrink(tb)
            else:
                th = divisors[0]
                break

    return tb, th, single_buffer, int(budget)


def mlp_forward(x, params, *, block_b=512, force_hsplit_th=None):
    """x: [B, D_in] -> [B, D_out], using params from prepare_mlp_params."""
    w1_p, b1_p, w2_p, b2_p = params["w1"], params["b1"], params["w2"], params["b2"]
    d_out = params["d_out"]
    D_in_p, H_p = w1_p.shape
    D_out_p = w2_p.shape[1]
    B = x.shape[0]

    tb, th, single_buffer, vmem_limit = _plan_tiles(
        B, D_in_p, H_p, D_out_p, w1_p.dtype, x.dtype, block_b,
        assume_single_buffer=True)

    if force_hsplit_th is not None:                 # testing hook for the H-split path
        th = int(force_hsplit_th)
        single_buffer = False
        assert H_p % th == 0, "force_hsplit_th must divide the padded hidden dim"

    try:
        return _mlp_forward_core(x, w1_p, b1_p, w2_p, b2_p,
                                 tb=tb, th=th, d_out=d_out,
                                 single_buffer=single_buffer,
                                 vmem_limit=vmem_limit)
    except Exception:
        if not single_buffer:
            raise
        # pl.Buffered(1) unsupported on this jax version: re-plan assuming
        # double-buffered resident weights and retry without pipeline_mode.
        tb, th, _, vmem_limit = _plan_tiles(
            B, D_in_p, H_p, D_out_p, w1_p.dtype, x.dtype, block_b,
            assume_single_buffer=False)
        return _mlp_forward_core(x, w1_p, b1_p, w2_p, b2_p,
                                 tb=tb, th=th, d_out=d_out,
                                 single_buffer=False,
                                 vmem_limit=vmem_limit)


def mlp_reference(x, w1, b1, w2, b2):
    h = jnp.maximum(x @ w1 + b1, 0.0)
    return h @ w2 + b2


if __name__ == "__main__":
    key = jax.random.PRNGKey(0)

    # --- Case 1: module-sized shapes (batch=8, input=16, hidden=32, output=4)
    B, D_in, H, D_out = 8, 16, 32, 4
    kx, k1, k2, k3, k4, key = jax.random.split(key, 6)
    x = jax.random.normal(kx, (B, D_in), dtype=jnp.float32)
    bound1 = 1.0 / (D_in ** 0.5)
    w1 = jax.random.uniform(k1, (D_in, H), jnp.float32, -bound1, bound1)
    b1 = jax.random.uniform(k2, (H,), jnp.float32, -bound1, bound1)
    bound2 = 1.0 / (H ** 0.5)
    w2 = jax.random.uniform(k3, (H, D_out), jnp.float32, -bound2, bound2)
    b2 = jax.random.uniform(k4, (D_out,), jnp.float32, -bound2, bound2)
    y_ref = mlp_reference(x, w1, b1, w2, b2)

    # Default path: bf16 MXU inputs, fp32 accumulation.
    params_bf16 = prepare_mlp_params(w1, b1, w2, b2)
    y_bf16 = jax.block_until_ready(mlp_forward(x, params_bf16))
    assert y_bf16.shape == (B, D_out)
    assert jnp.allclose(y_bf16, y_ref, rtol=5e-2, atol=5e-2)

    # fp32 MXU-input path: tight check.
    params_f32 = prepare_mlp_params(w1, b1, w2, b2, compute_dtype=jnp.float32)
    y_f32 = jax.block_until_ready(mlp_forward(x, params_f32))
    assert y_f32.shape == (B, D_out)
    assert jnp.allclose(y_f32, y_ref, rtol=1e-4, atol=1e-4)

    # --- Case 2: exercise batch tiling (grid_b > 1) and the H-split
    #     accumulator path used when weights don't fit VMEM residency (v7x).
    B2, D_in2, H2, D_out2 = 300, 64, 256, 8
    kx, k1, k2, k3, k4, key = jax.random.split(key, 6)
    x2 = jax.random.normal(kx, (B2, D_in2), dtype=jnp.float32)
    bound1 = 1.0 / (D_in2 ** 0.5)
    w1_2 = jax.random.uniform(k1, (D_in2, H2), jnp.float32, -bound1, bound1)
    b1_2 = jax.random.uniform(k2, (H2,), jnp.float32, -bound1, bound1)
    bound2 = 1.0 / (H2 ** 0.5)
    w2_2 = jax.random.uniform(k3, (H2, D_out2), jnp.float32, -bound2, bound2)
    b2_2 = jax.random.uniform(k4, (D_out2,), jnp.float32, -bound2, bound2)
    y2_ref = mlp_reference(x2, w1_2, b1_2, w2_2, b2_2)

    params2 = prepare_mlp_params(w1_2, b1_2, w2_2, b2_2,
                                 compute_dtype=jnp.float32)
    y2 = jax.block_until_ready(
        mlp_forward(x2, params2, block_b=128, force_hsplit_th=128))
    assert y2.shape == (B2, D_out2)
    assert jnp.allclose(y2, y2_ref, rtol=5e-3, atol=5e-3)

    print("KERNEL_OK")
</pallas_src>

<mosaic_0001>
module attributes {stable_mosaic.version = 11 : i64} {
  func.func @_mlp_kernel_resident(%arg0: i32, %arg1: memref<16x128xbf16, #tpu.memory_space<vmem>>, %arg2: memref<128x128xbf16, #tpu.memory_space<vmem>>, %arg3: memref<1x128xf32, #tpu.memory_space<vmem>>, %arg4: memref<128x128xbf16, #tpu.memory_space<vmem>>, %arg5: memref<1x128xf32, #tpu.memory_space<vmem>>, %arg6: memref<16x128xf32, #tpu.memory_space<vmem>>) attributes {dimension_semantics = [#tpu.dimension_semantics<parallel>], iteration_bounds = array<i64: 1>, scalar_prefetch = 0 : i64, scratch_operands = 0 : i64, tpu.core_type = #tpu.core_type<tc>, window_params = [{transform_indices = @transform_0, window_bounds = array<i64: 16, 128>}, {pipeline_mode = #tpu.pipeline_mode<synchronous>, transform_indices = @transform_1, window_bounds = array<i64: 128, 128>}, {pipeline_mode = #tpu.pipeline_mode<synchronous>, transform_indices = @transform_2, window_bounds = array<i64: 1, 128>}, {pipeline_mode = #tpu.pipeline_mode<synchronous>, transform_indices = @transform_3, window_bounds = array<i64: 128, 128>}, {pipeline_mode = #tpu.pipeline_mode<synchronous>, transform_indices = @transform_4, window_bounds = array<i64: 1, 128>}, {transform_indices = @transform_5, window_bounds = array<i64: 16, 128>}]} {
    %c0 = arith.constant 0 : index
    %c0_0 = arith.constant 0 : index
    %0 = vector.load %arg1[%c0, %c0_0] : memref<16x128xbf16, #tpu.memory_space<vmem>>, vector<16x128xbf16>
    %c0_1 = arith.constant 0 : index
    %c0_2 = arith.constant 0 : index
    %1 = vector.load %arg2[%c0_1, %c0_2] : memref<128x128xbf16, #tpu.memory_space<vmem>>, vector<128x128xbf16>
    %cst = arith.constant dense<0.000000e+00> : vector<16x128xf32>
    %2 = tpu.matmul %0, %1, %cst {dimension_numbers = #tpu.dot_dimension_numbers<[1], [0], [0], [1], [0, 0, 1, 1], [], []>} : vector<16x128xbf16>, vector<128x128xbf16>, vector<16x128xf32> -> vector<16x128xf32>
    %c0_3 = arith.constant 0 : index
    %c0_4 = arith.constant 0 : index
    %3 = vector.load %arg3[%c0_3, %c0_4] : memref<1x128xf32, #tpu.memory_space<vmem>>, vector<1x128xf32>
    %4 = vector.broadcast %3 : vector<1x128xf32> to vector<16x128xf32>
    %5 = arith.addf %2, %4 : vector<16x128xf32>
    %cst_5 = arith.constant 0.000000e+00 : f32
    %6 = vector.broadcast %cst_5 : f32 to vector<16x128xf32>
    %7 = arith.maximumf %5, %6 : vector<16x128xf32>
    %8 = arith.truncf %7 : vector<16x128xf32> to vector<16x128xbf16>
    %c0_6 = arith.constant 0 : index
    %c0_7 = arith.constant 0 : index
    %9 = vector.load %arg4[%c0_6, %c0_7] : memref<128x128xbf16, #tpu.memory_space<vmem>>, vector<128x128xbf16>
    %cst_8 = arith.constant dense<0.000000e+00> : vector<16x128xf32>
    %10 = tpu.matmul %8, %9, %cst_8 {dimension_numbers = #tpu.dot_dimension_numbers<[1], [0], [0], [1], [0, 0, 1, 1], [], []>} : vector<16x128xbf16>, vector<128x128xbf16>, vector<16x128xf32> -> vector<16x128xf32>
    %c0_9 = arith.constant 0 : index
    %c0_10 = arith.constant 0 : index
    %11 = vector.load %arg5[%c0_9, %c0_10] : memref<1x128xf32, #tpu.memory_space<vmem>>, vector<1x128xf32>
    %12 = vector.broadcast %11 : vector<1x128xf32> to vector<16x128xf32>
    %13 = arith.addf %10, %12 : vector<16x128xf32>
    %c0_11 = arith.constant 0 : index
    %c0_12 = arith.constant 0 : index
    %14 = vector.load %arg6[%c0_11, %c0_12] : memref<16x128xf32, #tpu.memory_space<vmem>>, vector<16x128xf32>
    tpu.vector_store %arg6[%c0_11, %c0_12], %13 {strides = array<i32>} : memref<16x128xf32, #tpu.memory_space<vmem>>, vector<16x128xf32>,
    return
  }
  func.func @transform_0(%arg0: i32) -> (i32, i32) {
    %c0_i32 = arith.constant 0 : i32
    %c0_i32_0 = arith.constant 0 : i32
    return %arg0, %c0_i32 : i32, i32
  }
  func.func @transform_1(%arg0: i32) -> (i32, i32) {
    %c0_i32 = arith.constant 0 : i32
    %c0_i32_0 = arith.constant 0 : i32
    %c0_i32_1 = arith.constant 0 : i32
    return %c0_i32, %c0_i32_0 : i32, i32
  }
  func.func @transform_2(%arg0: i32) -> (i32, i32) {
    %c0_i32 = arith.constant 0 : i32
    %c0_i32_0 = arith.constant 0 : i32
    %c0_i32_1 = arith.constant 0 : i32
    return %c0_i32, %c0_i32_0 : i32, i32
  }
  func.func @transform_3(%arg0: i32) -> (i32, i32) {
    %c0_i32 = arith.constant 0 : i32
    %c0_i32_0 = arith.constant 0 : i32
    %c0_i32_1 = arith.constant 0 : i32
    return %c0_i32, %c0_i32_0 : i32, i32
  }
  func.func @transform_4(%arg0: i32) -> (i32, i32) {
    %c0_i32 = arith.constant 0 : i32
    %c0_i32_0 = arith.constant 0 : i32
    %c0_i32_1 = arith.constant 0 : i32
    return %c0_i32, %c0_i32_0 : i32, i32
  }
  func.func @transform_5(%arg0: i32) -> (i32, i32) {
    %c0_i32 = arith.constant 0 : i32
    %c0_i32_0 = arith.constant 0 : i32
    return %arg0, %c0_i32 : i32, i32
  }
}

module attributes {stable_mosaic.version = 11 : i64} {
  func.func @_mlp_kernel_resident(%arg0: i32, %arg1: memref<16x128xbf16, #tpu.memory_space<vmem>>, %arg2: memref<128x128xbf16, #tpu.memory_space<vmem>>, %arg3: memref<1x128xf32, #tpu.memory_space<vmem>>, %arg4: memref<128x128xbf16, #tpu.memory_space<vmem>>, %arg5: memref<1x128xf32, #tpu.memory_space<vmem>>, %arg6: memref<16x128xf32, #tpu.memory_space<vmem>>) attributes {dimension_semantics = [#tpu.dimension_semantics<parallel>], iteration_bounds = array<i64: 1>, scalar_prefetch = 0 : i64, scratch_operands = 0 : i64, tpu.core_type = #tpu.core_type<tc>, window_params = [{transform_indices = @transform_0, window_bounds = array<i64: 16, 128>}, {pipeline_mode = #tpu.pipeline_mode<synchronous>, transform_indices = @transform_1, window_bounds = array<i64: 128, 128>}, {pipeline_mode = #tpu.pipeline_mode<synchronous>, transform_indices = @transform_2, window_bounds = array<i64: 1, 128>}, {pipeline_mode = #tpu.pipeline_mode<synchronous>, transform_indices = @transform_3, window_bounds = array<i64: 128, 128>}, {pipeline_mode = #tpu.pipeline_mode<synchronous>, transform_indices = @transform_4, window_bounds = array<i64: 1, 128>}, {transform_indices = @transform_5, window_bounds = array<i64: 16, 128>}]} {
    %c0 = arith.constant 0 : index
    %c0_0 = arith.constant 0 : index
    %0 = vector.load %arg1[%c0, %c0_0] : memref<16x128xbf16, #tpu.memory_space<vmem>>, vector<16x128xbf16>
    %c0_1 = arith.constant 0 : index
    %c0_2 = arith.constant 0 : index
    %1 = vector.load %arg2[%c0_1, %c0_2] : memref<128x128xbf16, #tpu.memory_space<vmem>>, vector<128x128xbf16>
    %cst = arith.constant dense<0.000000e+00> : vector<16x128xf32>
    %2 = tpu.matmul %0, %1, %cst {dimension_numbers = #tpu.dot_dimension_numbers<[1], [0], [0], [1], [0, 0, 1, 1], [], []>} : vector<16x128xbf16>, vector<128x128xbf16>, vector<16x128xf32> -> vector<16x128xf32>
    %c0_3 = arith.constant 0 : index
    %c0_4 = arith.constant 0 : index
    %3 = vector.load %arg3[%c0_3, %c0_4] : memref<1x128xf32, #tpu.memory_space<vmem>>, vector<1x128xf32>
    %4 = vector.broadcast %3 : vector<1x128xf32> to vector<16x128xf32>
    %5 = arith.addf %2, %4 : vector<16x128xf32>
    %cst_5 = arith.constant 0.000000e+00 : f32
    %6 = vector.broadcast %cst_5 : f32 to vector<16x128xf32>
    %7 = arith.maximumf %5, %6 : vector<16x128xf32>
    %8 = arith.truncf %7 : vector<16x128xf32> to vector<16x128xbf16>
    %c0_6 = arith.constant 0 : index
    %c0_7 = arith.constant 0 : index
    %9 = vector.load %arg4[%c0_6, %c0_7] : memref<128x128xbf16, #tpu.memory_space<vmem>>, vector<128x128xbf16>
    %cst_8 = arith.constant dense<0.000000e+00> : vector<16x128xf32>
    %10 = tpu.matmul %8, %9, %cst_8 {dimension_numbers = #tpu.dot_dimension_numbers<[1], [0], [0], [1], [0, 0, 1, 1], [], []>} : vector<16x128xbf16>, vector<128x128xbf16>, vector<16x128xf32> -> vector<16x128xf32>
    %c0_9 = arith.constant 0 : index
    %c0_10 = arith.constant 0 : index
    %11 = vector.load %arg5[%c0_9, %c0_10] : memref<1x128xf32, #tpu.memory_space<vmem>>, vector<1x128xf32>
    %12 = vector.broadcast %11 : vector<1x128xf32> to vector<16x128xf32>
    %13 = arith.addf %10, %12 : vector<16x128xf32>
    %c0_11 = arith.constant 0 : index
    %c0_12 = arith.constant 0 : index
    %14 = vector.load %arg6[%c0_11, %c0_12] : memref<16x128xf32, #tpu.memory_space<vmem>>, vector<16x128xf32>
    tpu.vector_store %arg6[%c0_11, %c0_12], %13 {strides = array<i32>} : memref<16x128xf32, #tpu.memory_space<vmem>>, vector<16x128xf32>,
    return
  }
  func.func @transform_0(%arg0: i32) -> (i32, i32) {
    %c0_i32 = arith.constant 0 : i32
    %c0_i32_0 = arith.constant 0 : i32
    return %arg0, %c0_i32 : i32, i32
  }
  func.func @transform_1(%arg0: i32) -> (i32, i32) {
    %c0_i32 = arith.constant 0 : i32
    %c0_i32_0 = arith.constant 0 : i32
    %c0_i32_1 = arith.constant 0 : i32
    return %c0_i32, %c0_i32_0 : i32, i32
  }
  func.func @transform_2(%arg0: i32) -> (i32, i32) {
    %c0_i32 = arith.constant 0 : i32
    %c0_i32_0 = arith.constant 0 : i32
    %c0_i32_1 = arith.constant 0 : i32
    return %c0_i32, %c0_i32_0 : i32, i32
  }
  func.func @transform_3(%arg0: i32) -> (i32, i32) {
    %c0_i32 = arith.constant 0 : i32
    %c0_i32_0 = arith.constant 0 : i32
    %c0_i32_1 = arith.constant 0 : i32
    return %c0_i32, %c0_i32_0 : i32, i32
  }
  func.func @transform_4(%arg0: i32) -> (i32, i32) {
    %c0_i32 = arith.constant 0 : i32
    %c0_i32_0 = arith.constant 0 : i32
    %c0_i32_1 = arith.constant 0 : i32
    return %c0_i32, %c0_i32_0 : i32, i32
  }
  func.func @transform_5(%arg0: i32) -> (i32, i32) {
    %c0_i32 = arith.constant 0 : i32
    %c0_i32_0 = arith.constant 0 : i32
    return %arg0, %c0_i32 : i32, i32
  }
}

</mosaic_0001>

<llo_original>
// kernel: _mlp_forward_core.1
$region0: #{_mlp_forward_core.1}
  #allocation0 [shape = 'u32[]', space=smem, size = 0x4, offset = 0x4, fixed_abs, tag = 'smem constant byte address 0x4 - core index']
  #allocation1 [shape = 'u32[72,128]{1,0:T(1,128)}', space=vmem, size = 0x9000, scoped, tag = 'internal scratch']
  %s0 = inlined_call_operand.vmem [shape: bf16[16,128], index: 0, kind: input, shape index: {}]
  %s1 = inlined_call_operand.hbm [shape: bf16[128,128], index: 1, kind: input, shape index: {}]
  %s2 = inlined_call_operand.vmem [shape: f32[1,128], index: 2, kind: input, shape index: {}]
  %s3 = inlined_call_operand.hbm [shape: bf16[128,128], index: 3, kind: input, shape index: {}]
  %s4 = inlined_call_operand.vmem [shape: f32[1,128], index: 4, kind: input, shape index: {}]
  %s5 = inlined_call_operand.vmem [shape: f32[16,128], index: 5, kind: output, shape index: {}]
  %s6 = sld [smem:[#allocation0]]
  $region38: #{_mlp_forward_core.1} parent=0
    _
  %s8 = ssub.s32 1, %s6
  %s9 = scalar_select 0, %s8, %s6
  $region1: #{_mlp_forward_core.1} parent=0
    #allocation2 [shape = 'u8[32768]{0}', space=vmem, size = 0x8000, scoped, tag = 'input window, operand 1, single buffered']
    #allocation3 [shape = 's32[1]{0}', space=sflag, size = 0x4, scoped, tag = 'scoped memory for _mlp_forward_core.1']
    #allocation4 [shape = 'u8[32768]{0}', space=vmem, size = 0x8000, scoped, tag = 'input window, operand 3, single buffered']
    #allocation5 [shape = 's32[1]{0}', space=sflag, size = 0x4, scoped, tag = 'scoped memory for _mlp_forward_core.1']
    %10 = vsyncpa [#allocation3], 0
    %11 = vsyncpa [#allocation5], 0
    // Predicated region
    $region2: #{_mlp_forward_core.1} parent=1 // pred_check
      _
    $region3: #{_mlp_forward_core.1} parent=1 // pred_check_branch
      %13 = sbr.rel (0) target = $region5
    $region4: #{_mlp_forward_core.1} parent=1 // pred_region
      _
    $region5: #{_mlp_forward_core.1} parent=1 // pred_fallthru
      _
    // Predicated region
    $region6: #{_mlp_forward_core.1} parent=1 // pred_check
      _
    $region7: #{_mlp_forward_core.1} parent=1 // pred_check_branch
      %15 = sbr.rel (0) target = $region9
    $region8: #{_mlp_forward_core.1} parent=1 // pred_region
      %17 = vsyncadd [#allocation3], 0
      %s18 = sshll.u32 %s1, 4
      %s19 = int_to_ptr.hbm [resolvable:$true] %s18
      %s20 = sshll.u32 [#allocation2], 4
      %s21 = int_to_ptr.vmem [resolvable:$true] %s20
      %26 = dma.hbm_to_vmem [thread:$0]  %s19, 1024, %s21, [#allocation3], 64, 64, 4
    $region9: #{_mlp_forward_core.1} parent=1 // pred_fallthru
      _
    // Predicated region
    $region10: #{_mlp_forward_core.1} parent=1 // pred_check
      _
    $region11: #{_mlp_forward_core.1} parent=1 // pred_check_branch
      %28 = sbr.rel (0) target = $region13
    $region12: #{_mlp_forward_core.1} parent=1 // pred_region
      _
    $region13: #{_mlp_forward_core.1} parent=1 // pred_fallthru
      _
    // Predicated region
    $region14: #{_mlp_forward_core.1} parent=1 // pred_check
      _
    $region15: #{_mlp_forward_core.1} parent=1 // pred_check_branch
      %30 = sbr.rel (0) target = $region17
    $region16: #{_mlp_forward_core.1} parent=1 // pred_region
      %32 = vsyncadd [#allocation5], 0
      %s33 = sshll.u32 %s3, 4
      %s34 = int_to_ptr.hbm [resolvable:$true] %s33
      %s35 = sshll.u32 [#allocation4], 4
      %s36 = int_to_ptr.vmem [resolvable:$true] %s35
      %41 = dma.hbm_to_vmem [thread:$0]  %s34, 1024, %s36, [#allocation5], 64, 64, 4
    $region17: #{_mlp_forward_core.1} parent=1 // pred_fallthru
      _
    // Predicated region
    $region18: #{_mlp_forward_core.1} parent=1 // pred_check
      _
    $region19: #{_mlp_forward_core.1} parent=1 // pred_check_branch
      %43 = sbr.rel (0) target = $region21
    $region20: #{_mlp_forward_core.1} parent=1 // pred_region
      _
    $region21: #{_mlp_forward_core.1} parent=1 // pred_fallthru
      _
    // Predicated region
    $region22: #{_mlp_forward_core.1} parent=1 // pred_check
      _
    $region23: #{_mlp_forward_core.1} parent=1 // pred_check_branch
      %45 = sbr.rel (0) target = $region25
    $region24: #{_mlp_forward_core.1} parent=1 // pred_region
      %47 = dma.done [#allocation3], 1024
    $region25: #{_mlp_forward_core.1} parent=1 // pred_fallthru
      _
    // Predicated region
    $region26: #{_mlp_forward_core.1} parent=1 // pred_check
      _
    $region27: #{_mlp_forward_core.1} parent=1 // pred_check_branch
      %49 = sbr.rel (0) target = $region29
    $region28: #{_mlp_forward_core.1} parent=1 // pred_region
      %51 = dma.done [#allocation5], 1024
    $region29: #{_mlp_forward_core.1} parent=1 // pred_fallthru
      _
    %v52 = vld [vmem:[%s0] sm:$0xf]
    %v53 = vld [vmem:[%s0 + $0x4] sm:$0xf]
    %v54 = vld [vmem:[#allocation2] sm:$0xf]
    %v55 = vld [vmem:[#allocation2 + $0x4] sm:$0xf]
    %v56 = vld [vmem:[#allocation2 + $0x8] sm:$0xf]
    %v57 = vld [vmem:[#allocation2 + $0xc] sm:$0xf]
    %v58 = vld [vmem:[#allocation2 + $0x10] sm:$0xf]
    %v59 = vld [vmem:[#allocation2 + $0x14] sm:$0xf]
    %v60 = vld [vmem:[#allocation2 + $0x18] sm:$0xf]
    %v61 = vld [vmem:[#allocation2 + $0x1c] sm:$0xf]
    %v62 = vld [vmem:[#allocation2 + $0x20] sm:$0xf]
    %v63 = vld [vmem:[#allocation2 + $0x24] sm:$0xf]
    %v64 = vld [vmem:[#allocation2 + $0x28] sm:$0xf]
    %v65 = vld [vmem:[#allocation2 + $0x2c] sm:$0xf]
    %v66 = vld [vmem:[#allocation2 + $0x30] sm:$0xf]
    %v67 = vld [vmem:[#allocation2 + $0x34] sm:$0xf]
    %v68 = vld [vmem:[#allocation2 + $0x38] sm:$0xf]
    %v69 = vld [vmem:[#allocation2 + $0x3c] sm:$0xf]
    %v70 = vld [vmem:[%s2] sm:$0x1]
    %v72 = vperm.slane %v70, 0
    %v76 = vunpack.c.l.b16 %v52
    %v77 = vunpack.c.l.b16 %v53
    %v78 = vpack.c.b16 %v77, %v76
    %v96 = vunpack.c.l.b16 %v54
    %v97 = vunpack.c.l.b16 %v55
    %v98 = vunpack.c.l.b16 %v56
    %v99 = vunpack.c.l.b16 %v57
    %v100 = vunpack.c.l.b16 %v58
    %v101 = vunpack.c.l.b16 %v59
    %v102 = vunpack.c.l.b16 %v60
    %v103 = vunpack.c.l.b16 %v61
    %v104 = vunpack.c.l.b16 %v62
    %v105 = vunpack.c.l.b16 %v63
    %v106 = vunpack.c.l.b16 %v64
    %v107 = vunpack.c.l.b16 %v65
    %v108 = vunpack.c.l.b16 %v66
    %v109 = vunpack.c.l.b16 %v67
    %v110 = vunpack.c.l.b16 %v68
    %v111 = vunpack.c.l.b16 %v69
    %v112 = vpack.c.b16 %v97, %v96
    %v113 = vpack.c.b16 %v99, %v98
    %v114 = vpack.c.b16 %v101, %v100
    %v115 = vpack.c.b16 %v103, %v102
    %v116 = vpack.c.b16 %v105, %v104
    %v117 = vpack.c.b16 %v107, %v106
    %v118 = vpack.c.b16 %v109, %v108
    %v119 = vpack.c.b16 %v111, %v110
    %128 = vmatpush.bf16.msra.mxu0 %v119
    %129 = vmatpush.bf16.msra.mxu0 %v118
    %130 = vmatpush.bf16.msra.mxu0 %v117
    %131 = vmatpush.bf16.msra.mxu0 %v116
    %132 = vmatpush.bf16.msra.mxu0 %v115
    %133 = vmatpush.bf16.msra.mxu0 %v114
    %134 = vmatpush.bf16.msra.mxu0 %v113
    %135 = vmatpush.bf16.msra.mxu0 %v112
    %136 = vmatmul.bf16.gmra.mxu0 %v78
    %v137 = vpop.f32.mrf.mxu0
    %v138 = vadd.f32 %v72, %v137
    %v139 = vpop.f32.mrf.mxu0
    %v140 = vadd.f32 %v72, %v139
    %141 = vdwg.mxu0
    %v142 = vmax.f32 %v138, 0.0
    %v143 = vmax.f32 %v140, 0.0
    %v144 = vpack.c.bf16 %v143, %v142
    %v145 = vld [vmem:[#allocation4] sm:$0xf]
    %v146 = vld [vmem:[#allocation4 + $0x4] sm:$0xf]
    %v147 = vld [vmem:[#allocation4 + $0x8] sm:$0xf]
    %v148 = vld [vmem:[#allocation4 + $0xc] sm:$0xf]
    %v149 = vld [vmem:[#allocation4 + $0x10] sm:$0xf]
    %v150 = vld [vmem:[#allocation4 + $0x14] sm:$0xf]
    %v151 = vld [vmem:[#allocation4 + $0x18] sm:$0xf]
    %v152 = vld [vmem:[#allocation4 + $0x1c] sm:$0xf]
    %v153 = vld [vmem:[#allocation4 + $0x20] sm:$0xf]
    %v154 = vld [vmem:[#allocation4 + $0x24] sm:$0xf]
    %v155 = vld [vmem:[#allocation4 + $0x28] sm:$0xf]
    %v156 = vld [vmem:[#allocation4 + $0x2c] sm:$0xf]
    %v157 = vld [vmem:[#allocation4 + $0x30] sm:$0xf]
    %v158 = vld [vmem:[#allocation4 + $0x34] sm:$0xf]
    %v159 = vld [vmem:[#allocation4 + $0x38] sm:$0xf]
    %v160 = vld [vmem:[#allocation4 + $0x3c] sm:$0xf]
    %v161 = vld [vmem:[%s4] sm:$0x1]
    %v163 = vperm.slane %v161, 0
    %v181 = vunpack.c.l.b16 %v145
    %v182 = vunpack.c.l.b16 %v146
    %v183 = vunpack.c.l.b16 %v147
    %v184 = vunpack.c.l.b16 %v148
    %v185 = vunpack.c.l.b16 %v149
    %v186 = vunpack.c.l.b16 %v150
    %v187 = vunpack.c.l.b16 %v151
    %v188 = vunpack.c.l.b16 %v152
    %v189 = vunpack.c.l.b16 %v153
    %v190 = vunpack.c.l.b16 %v154
    %v191 = vunpack.c.l.b16 %v155
    %v192 = vunpack.c.l.b16 %v156
    %v193 = vunpack.c.l.b16 %v157
    %v194 = vunpack.c.l.b16 %v158
    %v195 = vunpack.c.l.b16 %v159
    %v196 = vunpack.c.l.b16 %v160
    %v197 = vpack.c.b16 %v182, %v181
    %v198 = vpack.c.b16 %v184, %v183
    %v199 = vpack.c.b16 %v186, %v185
    %v200 = vpack.c.b16 %v188, %v187
    %v201 = vpack.c.b16 %v190, %v189
    %v202 = vpack.c.b16 %v192, %v191
    %v203 = vpack.c.b16 %v194, %v193
    %v204 = vpack.c.b16 %v196, %v195
    %213 = vmatpush.bf16.msra.mxu0 %v204
    %214 = vmatpush.bf16.msra.mxu0 %v203
    %215 = vmatpush.bf16.msra.mxu0 %v202
    %216 = vmatpush.bf16.msra.mxu0 %v201
    %217 = vmatpush.bf16.msra.mxu0 %v200
    %218 = vmatpush.bf16.msra.mxu0 %v199
    %219 = vmatpush.bf16.msra.mxu0 %v198
    %220 = vmatpush.bf16.msra.mxu0 %v197
    %221 = vmatmul.bf16.gmra.mxu0 %v144
    %v222 = vpop.f32.mrf.mxu0
    %v223 = vadd.f32 %v163, %v222
    %v224 = vpop.f32.mrf.mxu0
    %v225 = vadd.f32 %v163, %v224
    %226 = vdwg.mxu0
    %227 = vst [vmem:[%s5] sm:$0xff] %v223
    %228 = vst [vmem:[%s5 + $0x8] sm:$0xff] %v225
    // Predicated region
    $region30: #{_mlp_forward_core.1} parent=1 // pred_check
      _
    $region31: #{_mlp_forward_core.1} parent=1 // pred_check_branch
      %230 = sbr.rel (0) target = $region33
    $region32: #{_mlp_forward_core.1} parent=1 // pred_region
      _
    $region33: #{_mlp_forward_core.1} parent=1 // pred_fallthru
      _
    // Predicated region
    $region34: #{_mlp_forward_core.1} parent=1 // pred_check
      _
    $region35: #{_mlp_forward_core.1} parent=1 // pred_check_branch
      %232 = sbr.rel (0) target = $region37
    $region36: #{_mlp_forward_core.1} parent=1 // pred_region
      _
    $region37: #{_mlp_forward_core.1} parent=1 // pred_fallthru
      _
    %233 = vsyncpa [#allocation3], 1
    %234 = vsyncpa [#allocation5], 1

// kernel: _mlp_forward_core.1
$region0: #{_mlp_forward_core.1}
  #allocation0 [shape = 'u32[]', space=smem, size = 0x4, offset = 0x4, fixed_abs, tag = 'smem constant byte address 0x4 - core index']
  #allocation1 [shape = 'u32[72,128]{1,0:T(1,128)}', space=vmem, size = 0x9000, scoped, tag = 'internal scratch']
  %s0 = inlined_call_operand.vmem [shape: bf16[16,128], index: 0, kind: input, shape index: {}]
  %s1 = inlined_call_operand.hbm [shape: bf16[128,128], index: 1, kind: input, shape index: {}]
  %s2 = inlined_call_operand.vmem [shape: f32[1,128], index: 2, kind: input, shape index: {}]
  %s3 = inlined_call_operand.hbm [shape: bf16[128,128], index: 3, kind: input, shape index: {}]
  %s4 = inlined_call_operand.vmem [shape: f32[1,128], index: 4, kind: input, shape index: {}]
  %s5 = inlined_call_operand.vmem [shape: f32[16,128], index: 5, kind: output, shape index: {}]
  %s6 = sld [smem:[#allocation0]]
  $region38: #{_mlp_forward_core.1} parent=0
    _
  %s8 = ssub.s32 1, %s6
  %s9 = scalar_select 0, %s8, %s6
  $region1: #{_mlp_forward_core.1} parent=0
    #allocation2 [shape = 'u8[32768]{0}', space=vmem, size = 0x8000, scoped, tag = 'input window, operand 1, single buffered']
    #allocation3 [shape = 's32[1]{0}', space=sflag, size = 0x4, scoped, tag = 'scoped memory for _mlp_forward_core.1']
    #allocation4 [shape = 'u8[32768]{0}', space=vmem, size = 0x8000, scoped, tag = 'input window, operand 3, single buffered']
    #allocation5 [shape = 's32[1]{0}', space=sflag, size = 0x4, scoped, tag = 'scoped memory for _mlp_forward_core.1']
    %10 = vsyncpa [#allocation3], 0
    %11 = vsyncpa [#allocation5], 0
    // Predicated region
    $region2: #{_mlp_forward_core.1} parent=1 // pred_check
      _
    $region3: #{_mlp_forward_core.1} parent=1 // pred_check_branch
      %13 = sbr.rel (0) target = $region5
    $region4: #{_mlp_forward_core.1} parent=1 // pred_region
      _
    $region5: #{_mlp_forward_core.1} parent=1 // pred_fallthru
      _
    // Predicated region
    $region6: #{_mlp_forward_core.1} parent=1 // pred_check
      _
    $region7: #{_mlp_forward_core.1} parent=1 // pred_check_branch
      %15 = sbr.rel (0) target = $region9
    $region8: #{_mlp_forward_core.1} parent=1 // pred_region
      %17 = vsyncadd [#allocation3], 0
      %s18 = sshll.u32 %s1, 4
      %s19 = int_to_ptr.hbm [resolvable:$true] %s18
      %s20 = sshll.u32 [#allocation2], 4
      %s21 = int_to_ptr.vmem [resolvable:$true] %s20
      %26 = dma.hbm_to_vmem [thread:$0]  %s19, 1024, %s21, [#allocation3], 64, 64, 4
    $region9: #{_mlp_forward_core.1} parent=1 // pred_fallthru
      _
    // Predicated region
    $region10: #{_mlp_forward_core.1} parent=1 // pred_check
      _
    $region11: #{_mlp_forward_core.1} parent=1 // pred_check_branch
      %28 = sbr.rel (0) target = $region13
    $region12: #{_mlp_forward_core.1} parent=1 // pred_region
      _
    $region13: #{_mlp_forward_core.1} parent=1 // pred_fallthru
      _
    // Predicated region
    $region14: #{_mlp_forward_core.1} parent=1 // pred_check
      _
    $region15: #{_mlp_forward_core.1} parent=1 // pred_check_branch
      %30 = sbr.rel (0) target = $region17
    $region16: #{_mlp_forward_core.1} parent=1 // pred_region
      %32 = vsyncadd [#allocation5], 0
      %s33 = sshll.u32 %s3, 4
      %s34 = int_to_ptr.hbm [resolvable:$true] %s33
      %s35 = sshll.u32 [#allocation4], 4
      %s36 = int_to_ptr.vmem [resolvable:$true] %s35
      %41 = dma.hbm_to_vmem [thread:$0]  %s34, 1024, %s36, [#allocation5], 64, 64, 4
    $region17: #{_mlp_forward_core.1} parent=1 // pred_fallthru
      _
    // Predicated region
    $region18: #{_mlp_forward_core.1} parent=1 // pred_check
      _
    $region19: #{_mlp_forward_core.1} parent=1 // pred_check_branch
      %43 = sbr.rel (0) target = $region21
    $region20: #{_mlp_forward_core.1} parent=1 // pred_region
      _
    $region21: #{_mlp_forward_core.1} parent=1 // pred_fallthru
      _
    // Predicated region
    $region22: #{_mlp_forward_core.1} parent=1 // pred_check
      _
    $region23: #{_mlp_forward_core.1} parent=1 // pred_check_branch
      %45 = sbr.rel (0) target = $region25
    $region24: #{_mlp_forward_core.1} parent=1 // pred_region
      %47 = dma.done [#allocation3], 1024
    $region25: #{_mlp_forward_core.1} parent=1 // pred_fallthru
      _
    // Predicated region
    $region26: #{_mlp_forward_core.1} parent=1 // pred_check
      _
    $region27: #{_mlp_forward_core.1} parent=1 // pred_check_branch
      %49 = sbr.rel (0) target = $region29
    $region28: #{_mlp_forward_core.1} parent=1 // pred_region
      %51 = dma.done [#allocation5], 1024
    $region29: #{_mlp_forward_core.1} parent=1 // pred_fallthru
      _
    %v52 = vld [vmem:[%s0] sm:$0xf]
    %v53 = vld [vmem:[%s0 + $0x4] sm:$0xf]
    %v54 = vld [vmem:[#allocation2] sm:$0xf]
    %v55 = vld [vmem:[#allocation2 + $0x4] sm:$0xf]
    %v56 = vld [vmem:[#allocation2 + $0x8] sm:$0xf]
    %v57 = vld [vmem:[#allocation2 + $0xc] sm:$0xf]
    %v58 = vld [vmem:[#allocation2 + $0x10] sm:$0xf]
    %v59 = vld [vmem:[#allocation2 + $0x14] sm:$0xf]
    %v60 = vld [vmem:[#allocation2 + $0x18] sm:$0xf]
    %v61 = vld [vmem:[#allocation2 + $0x1c] sm:$0xf]
    %v62 = vld [vmem:[#allocation2 + $0x20] sm:$0xf]
    %v63 = vld [vmem:[#allocation2 + $0x24] sm:$0xf]
    %v64 = vld [vmem:[#allocation2 + $0x28] sm:$0xf]
    %v65 = vld [vmem:[#allocation2 + $0x2c] sm:$0xf]
    %v66 = vld [vmem:[#allocation2 + $0x30] sm:$0xf]
    %v67 = vld [vmem:[#allocation2 + $0x34] sm:$0xf]
    %v68 = vld [vmem:[#allocation2 + $0x38] sm:$0xf]
    %v69 = vld [vmem:[#allocation2 + $0x3c] sm:$0xf]
    %v70 = vld [vmem:[%s2] sm:$0x1]
    %v72 = vperm.slane %v70, 0
    %v76 = vunpack.c.l.b16 %v52
    %v77 = vunpack.c.l.b16 %v53
    %v78 = vpack.c.b16 %v77, %v76
    %v96 = vunpack.c.l.b16 %v54
    %v97 = vunpack.c.l.b16 %v55
    %v98 = vunpack.c.l.b16 %v56
    %v99 = vunpack.c.l.b16 %v57
    %v100 = vunpack.c.l.b16 %v58
    %v101 = vunpack.c.l.b16 %v59
    %v102 = vunpack.c.l.b16 %v60
    %v103 = vunpack.c.l.b16 %v61
    %v104 = vunpack.c.l.b16 %v62
    %v105 = vunpack.c.l.b16 %v63
    %v106 = vunpack.c.l.b16 %v64
    %v107 = vunpack.c.l.b16 %v65
    %v108 = vunpack.c.l.b16 %v66
    %v109 = vunpack.c.l.b16 %v67
    %v110 = vunpack.c.l.b16 %v68
    %v111 = vunpack.c.l.b16 %v69
    %v112 = vpack.c.b16 %v97, %v96
    %v113 = vpack.c.b16 %v99, %v98
    %v114 = vpack.c.b16 %v101, %v100
    %v115 = vpack.c.b16 %v103, %v102
    %v116 = vpack.c.b16 %v105, %v104
    %v117 = vpack.c.b16 %v107, %v106
    %v118 = vpack.c.b16 %v109, %v108
    %v119 = vpack.c.b16 %v111, %v110
    %128 = vmatpush.bf16.msra.mxu0 %v119
    %129 = vmatpush.bf16.msra.mxu0 %v118
    %130 = vmatpush.bf16.msra.mxu0 %v117
    %131 = vmatpush.bf16.msra.mxu0 %v116
    %132 = vmatpush.bf16.msra.mxu0 %v115
    %133 = vmatpush.bf16.msra.mxu0 %v114
    %134 = vmatpush.bf16.msra.mxu0 %v113
    %135 = vmatpush.bf16.msra.mxu0 %v112
    %136 = vmatmul.bf16.gmra.mxu0 %v78
    %v137 = vpop.f32.mrf.mxu0
    %v138 = vadd.f32 %v72, %v137
    %v139 = vpop.f32.mrf.mxu0
    %v140 = vadd.f32 %v72, %v139
    %141 = vdwg.mxu0
    %v142 = vmax.f32 %v138, 0.0
    %v143 = vmax.f32 %v140, 0.0
    %v144 = vpack.c.bf16 %v143, %v142
    %v145 = vld [vmem:[#allocation4] sm:$0xf]
    %v146 = vld [vmem:[#allocation4 + $0x4] sm:$0xf]
    %v147 = vld [vmem:[#allocation4 + $0x8] sm:$0xf]
    %v148 = vld [vmem:[#allocation4 + $0xc] sm:$0xf]
    %v149 = vld [vmem:[#allocation4 + $0x10] sm:$0xf]
    %v150 = vld [vmem:[#allocation4 + $0x14] sm:$0xf]
    %v151 = vld [vmem:[#allocation4 + $0x18] sm:$0xf]
    %v152 = vld [vmem:[#allocation4 + $0x1c] sm:$0xf]
    %v153 = vld [vmem:[#allocation4 + $0x20] sm:$0xf]
    %v154 = vld [vmem:[#allocation4 + $0x24] sm:$0xf]
    %v155 = vld [vmem:[#allocation4 + $0x28] sm:$0xf]
    %v156 = vld [vmem:[#allocation4 + $0x2c] sm:$0xf]
    %v157 = vld [vmem:[#allocation4 + $0x30] sm:$0xf]
    %v158 = vld [vmem:[#allocation4 + $0x34] sm:$0xf]
    %v159 = vld [vmem:[#allocation4 + $0x38] sm:$0xf]
    %v160 = vld [vmem:[#allocation4 + $0x3c] sm:$0xf]
    %v161 = vld [vmem:[%s4] sm:$0x1]
    %v163 = vperm.slane %v161, 0
    %v181 = vunpack.c.l.b16 %v145
    %v182 = vunpack.c.l.b16 %v146
    %v183 = vunpack.c.l.b16 %v147
    %v184 = vunpack.c.l.b16 %v148
    %v185 = vunpack.c.l.b16 %v149
    %v186 = vunpack.c.l.b16 %v150
    %v187 = vunpack.c.l.b16 %v151
    %v188 = vunpack.c.l.b16 %v152
    %v189 = vunpack.c.l.b16 %v153
    %v190 = vunpack.c.l.b16 %v154
    %v191 = vunpack.c.l.b16 %v155
    %v192 = vunpack.c.l.b16 %v156
    %v193 = vunpack.c.l.b16 %v157
    %v194 = vunpack.c.l.b16 %v158
    %v195 = vunpack.c.l.b16 %v159
    %v196 = vunpack.c.l.b16 %v160
    %v197 = vpack.c.b16 %v182, %v181
    %v198 = vpack.c.b16 %v184, %v183
    %v199 = vpack.c.b16 %v186, %v185
    %v200 = vpack.c.b16 %v188, %v187
    %v201 = vpack.c.b16 %v190, %v189
    %v202 = vpack.c.b16 %v192, %v191
    %v203 = vpack.c.b16 %v194, %v193
    %v204 = vpack.c.b16 %v196, %v195
    %213 = vmatpush.bf16.msra.mxu0 %v204
    %214 = vmatpush.bf16.msra.mxu0 %v203
    %215 = vmatpush.bf16.msra.mxu0 %v202
    %216 = vmatpush.bf16.msra.mxu0 %v201
    %217 = vmatpush.bf16.msra.mxu0 %v200
    %218 = vmatpush.bf16.msra.mxu0 %v199
    %219 = vmatpush.bf16.msra.mxu0 %v198
    %220 = vmatpush.bf16.msra.mxu0 %v197
    %221 = vmatmul.bf16.gmra.mxu0 %v144
    %v222 = vpop.f32.mrf.mxu0
    %v223 = vadd.f32 %v163, %v222
    %v224 = vpop.f32.mrf.mxu0
    %v225 = vadd.f32 %v163, %v224
    %226 = vdwg.mxu0
    %227 = vst [vmem:[%s5] sm:$0xff] %v223
    %228 = vst [vmem:[%s5 + $0x8] sm:$0xff] %v225
    // Predicated region
    $region30: #{_mlp_forward_core.1} parent=1 // pred_check
      _
    $region31: #{_mlp_forward_core.1} parent=1 // pred_check_branch
      %230 = sbr.rel (0) target = $region33
    $region32: #{_mlp_forward_core.1} parent=1 // pred_region
      _
    $region33: #{_mlp_forward_core.1} parent=1 // pred_fallthru
      _
    // Predicated region
    $region34: #{_mlp_forward_core.1} parent=1 // pred_check
      _
    $region35: #{_mlp_forward_core.1} parent=1 // pred_check_branch
      %232 = sbr.rel (0) target = $region37
    $region36: #{_mlp_forward_core.1} parent=1 // pred_region
      _
    $region37: #{_mlp_forward_core.1} parent=1 // pred_fallthru
      _
    %233 = vsyncpa [#allocation3], 1
    %234 = vsyncpa [#allocation5], 1

</llo_original>
